<compile_context>
chip_gen: v7x
topology: tpu7x:2x2x1
jax: 0.10.0
libtpu: 0.0.40
codegen_flags: <defaults>
</compile_context>

<pallas_src>
import math

import jax
import jax.numpy as jnp
from jax.experimental import pallas as pl
from jax.experimental.pallas import tpu as pltpu


# ----------------------------- in-kernel math ------------------------------

_SQRT_HALF = 0.7071067811865476


def _erf(x):
    # Abramowitz & Stegun 7.1.26, |err| < 1.5e-7 (f32-accurate). Keeps the
    # exact (erf-based) nn.GELU semantics using only elementwise ops that
    # lower on Mosaic; exp() lands on the EUP slot.
    p = 0.3275911
    a1 = 0.254829592
    a2 = -0.284496736
    a3 = 1.421413741
    a4 = -1.453152027
    a5 = 1.061405429
    sign = jnp.where(x >= 0.0, 1.0, -1.0)
    ax = jnp.abs(x)
    t = 1.0 / (1.0 + p * ax)
    poly = ((((a5 * t + a4) * t + a3) * t + a2) * t + a1) * t
    return sign * (1.0 - poly * jnp.exp(-ax * ax))


def _gelu_exact(x):
    return 0.5 * x * (1.0 + _erf(x * _SQRT_HALF))


def _round_up(x, m):
    return (x + m - 1) // m * m


# ------------------------------ fused Pallas kernel -------------------------

def _fused_adaptor_kernel(patches_ref, tokens_ref,
                          conv_w_ref, conv_b_ref,
                          emb_w_ref, emb_b_ref,
                          light_w_ref, light_b_ref,
                          shared_w_ref, shared_b_ref,
                          out_ref, sum_ref):
    """Grid = (row_tiles, depth); depth is the inner axis.

    patches_ref : (tm, Kp)      im2col rows of the FFT-filtered image
    tokens_ref  : (tm, E)       flattened ViT-embedding tokens
    conv_w_ref  : (Kp, cp)      PatchEmbed2 conv as a matmul (resident)
    emb_w_ref   : (E, cp)       embedding_generator          (resident)
    light_w_ref : (1, cp, cp)   lightweight_mlp_d            (indexed by d)
    shared_w_ref: (cp, E)       shared_mlp                   (resident)
    out_ref     : (1, tm, E)
    sum_ref     : VMEM scratch (tm, cp) f32 — hc + emb carried across depth.
    """
    d = pl.program_id(1)

    # hc + emb is depth-invariant: compute once per row tile, keep in VMEM.
    @pl.when(d == 0)
    def _():
        hc = jnp.dot(patches_ref[...], conv_w_ref[...],
                     preferred_element_type=jnp.float32) + conv_b_ref[...]
        emb = jnp.dot(tokens_ref[...], emb_w_ref[...],
                      preferred_element_type=jnp.float32) + emb_b_ref[...]
        sum_ref[...] = hc + emb

    s = sum_ref[...].astype(light_w_ref.dtype)
    h = jnp.dot(s, light_w_ref[0],
                preferred_element_type=jnp.float32) + light_b_ref[0]
    h = _gelu_exact(h)                                 # exact-erf GELU in f32
    out = jnp.dot(h.astype(shared_w_ref.dtype), shared_w_ref[...],
                  preferred_element_type=jnp.float32) + shared_b_ref[...]
    out_ref[0] = out.astype(out_ref.dtype)


def fused_adaptor_prompts(patches, tokens, conv_w, conv_b, emb_w, emb_b,
                          light_w, light_b, shared_w, shared_b,
                          *, compute_dtype=jnp.float32, tile_m=512):
    """One pallas_call for the whole adaptor pipeline.

    patches: (M, Kp), tokens: (M, E), light_w: (D, cp, cp) -> (D, M, E) f32.
    compute_dtype=jnp.bfloat16 casts matmul operands only (f32 accumulate,
    f32 biases/GELU) — recommended for v5e/v6e MXU throughput.
    """
    M, Kp = patches.shape
    E = tokens.shape[1]
    depth, cp, _ = light_w.shape

    tm = min(int(tile_m), _round_up(M, 8))
    m_pad = _round_up(M, tm)
    if m_pad != M:
        patches = jnp.pad(patches, ((0, m_pad - M), (0, 0)))
        tokens = jnp.pad(tokens, ((0, m_pad - M), (0, 0)))

    cd = compute_dtype
    args = (
        patches.astype(cd),
        tokens.astype(cd),
        conv_w.astype(cd),
        conv_b.reshape(1, cp).astype(jnp.float32),
        emb_w.astype(cd),
        emb_b.reshape(1, cp).astype(jnp.float32),
        light_w.astype(cd),
        light_b.astype(jnp.float32),
        shared_w.astype(cd),
        shared_b.reshape(1, E).astype(jnp.float32),
    )

    out = pl.pallas_call(
        _fused_adaptor_kernel,
        out_shape=jax.ShapeDtypeStruct((depth, m_pad, E), jnp.float32),
        grid_spec=pltpu.PrefetchScalarGridSpec(
            num_scalar_prefetch=0,
            grid=(m_pad // tm, depth),   # depth innermost -> scratch reuse
            in_specs=[
                pl.BlockSpec((tm, Kp), lambda m, d: (m, 0)),        # patches
                pl.BlockSpec((tm, E), lambda m, d: (m, 0)),         # tokens
                pl.BlockSpec((Kp, cp), lambda m, d: (0, 0)),        # conv W
                pl.BlockSpec((1, cp), lambda m, d: (0, 0)),         # conv b
                pl.BlockSpec((E, cp), lambda m, d: (0, 0)),         # embed W
                pl.BlockSpec((1, cp), lambda m, d: (0, 0)),         # embed b
                pl.BlockSpec((1, cp, cp), lambda m, d: (d, 0, 0)),  # light W_d
                pl.BlockSpec((1, 1, cp), lambda m, d: (d, 0, 0)),   # light b_d
                pl.BlockSpec((cp, E), lambda m, d: (0, 0)),         # shared W
                pl.BlockSpec((1, E), lambda m, d: (0, 0)),          # shared b
            ],
            out_specs=pl.BlockSpec((1, tm, E), lambda m, d: (d, m, 0)),
            scratch_shapes=[pltpu.VMEM((tm, cp), jnp.float32)],
        ),
        compiler_params=pltpu.CompilerParams(
            dimension_semantics=("parallel", "arbitrary"),
            vmem_limit_bytes=32 * 1024 * 1024,   # safe on v5e/v6e/v7x
        ),
    )(*args)

    return out[:, :M, :]


# ------------------------------- JAX glue -----------------------------------

def fft_highpass(x, rate):
    """Exact port of MedicalAdaptor.fft (complex FFT stays in XLA; no Pallas
    FFT primitive exists)."""
    w, h = x.shape[-2], x.shape[-1]
    line = int((w * h * rate) ** 0.5 // 2)
    mask = jnp.zeros(x.shape, dtype=x.dtype)
    mask = mask.at[:, :, w // 2 - line: w // 2 + line,
                   h // 2 - line: h // 2 + line].set(1.0)
    f = jnp.fft.fftshift(jnp.fft.fft2(x, norm="forward"))
    f = f * (1.0 - mask)
    f = jnp.fft.ifftshift(jnp.complex64(f.real + 1j * f.imag))
    inv = jnp.fft.ifft2(f, norm="forward").real
    return jnp.abs(inv)


def im2col(x, p):
    """NCHW image -> (N, num_patches, C*p*p), flattened in (c, ki, kj) order
    to match nn.Conv2d weight.reshape(out, -1)."""
    N, C, H, W = x.shape
    Hp, Wp = H // p, W // p
    x = x.reshape(N, C, Hp, p, Wp, p)
    x = x.transpose(0, 2, 4, 1, 3, 5)
    return x.reshape(N, Hp * Wp, C * p * p)


def tokens_from_embed(x_embed):
    """Faithful port of init_embeddings' layout handling:
        N, C, H, W = x.permute(0, 3, 1, 2).shape
        x = x.reshape(N, C, H * W).permute(0, 2, 1)
    i.e. the channels-last (N,H,W,C) tensor is reinterpreted by a raw reshape
    (not a transpose) as (N, C, H*W) before flattening to (N, H*W, C) tokens —
    exactly what the reference PyTorch code computes."""
    N, H, W, E = x_embed.shape
    return x_embed.reshape(N, E, H * W).transpose(0, 2, 1)


class MedicalAdaptorPallas:
    def __init__(self, scale_factor, embed_dim, depth, freq_nums,
                 img_size, patch_size, key, in_chans=3):
        self.scale_factor = scale_factor
        self.embed_dim = embed_dim
        self.depth = depth
        self.freq_nums = freq_nums
        self.img_size = img_size
        self.patch_size = patch_size
        self.in_chans = in_chans
        cp = embed_dim // scale_factor
        self.cp = cp

        keys = jax.random.split(key, 3 + depth)
        std = 0.02  # trunc_normal_(std=0.02, a=-2, b=2) == N(0, 0.02^2) to f32
        # Linear weights stored already transposed: (in_features, out_features).
        self.shared_mlp_w = std * jax.random.normal(keys[0], (cp, embed_dim), jnp.float32)
        self.shared_mlp_b = jnp.zeros((embed_dim,), jnp.float32)
        self.embed_gen_w = std * jax.random.normal(keys[1], (embed_dim, cp), jnp.float32)
        self.embed_gen_b = jnp.zeros((cp,), jnp.float32)
        self.light_w = jnp.stack(
            [std * jax.random.normal(keys[3 + i], (cp, cp), jnp.float32)
             for i in range(depth)])                      # (D, cp, cp)
        self.light_b = jnp.zeros((depth, 1, cp), jnp.float32)
        # PatchEmbed2 conv: normal(0, sqrt(2/fan_out)), bias 0.
        fan_out = patch_size * patch_size * cp
        conv_w = math.sqrt(2.0 / fan_out) * jax.random.normal(
            keys[2], (cp, in_chans, patch_size, patch_size), jnp.float32)
        self.conv_w_mat = conv_w.reshape(cp, -1).T        # (C*p*p, cp)
        self.conv_b = jnp.zeros((cp,), jnp.float32)

    # ---- fused Pallas forward (hot path) ----
    def forward(self, x_image, x_embed, *, compute_dtype=jnp.float32):
        N = x_image.shape[0]
        patches = im2col(fft_highpass(x_image, self.freq_nums), self.patch_size)
        _, P, Kp = patches.shape
        tokens = tokens_from_embed(x_embed)               # (N, T, E)
        T = tokens.shape[1]
        assert T == P, "ViT token grid must match PatchEmbed2 patch count"
        out = fused_adaptor_prompts(
            patches.reshape(N * P, Kp),
            tokens.reshape(N * T, self.embed_dim),
            self.conv_w_mat, self.conv_b,
            self.embed_gen_w, self.embed_gen_b,
            self.light_w, self.light_b,
            self.shared_mlp_w, self.shared_mlp_b,
            compute_dtype=compute_dtype)
        return [out[i].reshape(N, P, self.embed_dim) for i in range(self.depth)]

    # ---- per-stage methods (plain JAX/XLA reference path; forward() fuses
    #      the same pipeline into one Pallas kernel) ----
    def init_handcrafted(self, x_image):
        x = fft_highpass(x_image, self.freq_nums)
        patches = im2col(x, self.patch_size)
        return patches @ self.conv_w_mat + self.conv_b        # (N, P, cp)

    def init_embeddings(self, x_embed):
        return tokens_from_embed(x_embed) @ self.embed_gen_w + self.embed_gen_b

    def get_prompt(self, handcrafted, embedding):
        prompts = []
        for i in range(self.depth):
            h = (handcrafted + embedding) @ self.light_w[i] + self.light_b[i]
            h = jax.nn.gelu(h, approximate=False)
            prompts.append(h @ self.shared_mlp_w + self.shared_mlp_b)
        return prompts


# ------------------------------ plain-JAX reference -------------------------

def reference_forward(m: MedicalAdaptorPallas, x_image, x_embed):
    return m.get_prompt(m.init_handcrafted(x_image), m.init_embeddings(x_embed))


# ---------------------------------- main -------------------------------------

if __name__ == "__main__":
    key = jax.random.PRNGKey(0)
    k_img, k_emb, k_par = jax.random.split(key, 3)

    # Small shapes: embed_dim=32, scale_factor=4 (cp=8), img 16x16, patch 8,
    # depth=2, batch 2.  x_image is the NCHW image; x_embed is the
    # (N, Hp, Wp, embed_dim) ViT patch embedding fed to init_embeddings.
    x_image = jax.random.normal(k_img, (2, 3, 16, 16), jnp.float32)
    x_embed = jax.random.normal(k_emb, (2, 2, 2, 32), jnp.float32)

    adaptor = MedicalAdaptorPallas(scale_factor=4, embed_dim=32, depth=2,
                                   freq_nums=0.25, img_size=16, patch_size=8,
                                   key=k_par)

    # f32 fused-kernel path: bitwise-faithful semantics, tight tolerance.
    prompts = adaptor.forward(x_image, x_embed)
    prompts = [jax.block_until_ready(p) for p in prompts]

    refs = reference_forward(adaptor, x_image, x_embed)
    for p, r in zip(prompts, refs):
        assert p.shape == (2, 4, 32) and p.dtype == jnp.float32
        assert jnp.allclose(p, r, atol=1e-4, rtol=1e-4), \
            f"mismatch: {jnp.max(jnp.abs(p - r))}"

    # bf16-operand / f32-accumulate MXU path (v5e/v6e recommendation):
    # loose sanity check against the f32 reference.
    prompts_bf16 = adaptor.forward(x_image, x_embed, compute_dtype=jnp.bfloat16)
    prompts_bf16 = [jax.block_until_ready(p) for p in prompts_bf16]
    for p, r in zip(prompts_bf16, refs):
        err = float(jnp.max(jnp.abs(p - r)))
        scale = float(jnp.max(jnp.abs(r)))
        assert err < 0.15 * scale + 1e-4, f"bf16 path off by {err} (scale {scale})"

    print("KERNEL_OK")
</pallas_src>

<mosaic_0001>
module attributes {stable_mosaic.version = 11 : i64} {
  func.func @_fused_adaptor_kernel(%arg0: i32, %arg1: i32, %arg2: memref<8x192xf32, #tpu.memory_space<vmem>>, %arg3: memref<8x32xf32, #tpu.memory_space<vmem>>, %arg4: memref<192x8xf32, #tpu.memory_space<vmem>>, %arg5: memref<1x8xf32, #tpu.memory_space<vmem>>, %arg6: memref<32x8xf32, #tpu.memory_space<vmem>>, %arg7: memref<1x8xf32, #tpu.memory_space<vmem>>, %arg8: memref<1x8x8xf32, #tpu.memory_space<vmem>>, %arg9: memref<1x1x8xf32, #tpu.memory_space<vmem>>, %arg10: memref<8x32xf32, #tpu.memory_space<vmem>>, %arg11: memref<1x32xf32, #tpu.memory_space<vmem>>, %arg12: memref<1x8x32xf32, #tpu.memory_space<vmem>>, %arg13: memref<8x8xf32, #tpu.memory_space<vmem>>) attributes {dimension_semantics = [#tpu.dimension_semantics<parallel>, #tpu.dimension_semantics<arbitrary>], iteration_bounds = array<i64: 1, 2>, scalar_prefetch = 0 : i64, scratch_operands = 1 : i64, tpu.core_type = #tpu.core_type<tc>, window_params = [{transform_indices = @transform_0, window_bounds = array<i64: 8, 192>}, {transform_indices = @transform_1, window_bounds = array<i64: 8, 32>}, {pipeline_mode = #tpu.pipeline_mode<synchronous>, transform_indices = @transform_2, window_bounds = array<i64: 192, 8>}, {pipeline_mode = #tpu.pipeline_mode<synchronous>, transform_indices = @transform_3, window_bounds = array<i64: 1, 8>}, {pipeline_mode = #tpu.pipeline_mode<synchronous>, transform_indices = @transform_4, window_bounds = array<i64: 32, 8>}, {pipeline_mode = #tpu.pipeline_mode<synchronous>, transform_indices = @transform_5, window_bounds = array<i64: 1, 8>}, {transform_indices = @transform_6, window_bounds = array<i64: 1, 8, 8>}, {transform_indices = @transform_7, window_bounds = array<i64: 1, 1, 8>}, {pipeline_mode = #tpu.pipeline_mode<synchronous>, transform_indices = @transform_8, window_bounds = array<i64: 8, 32>}, {pipeline_mode = #tpu.pipeline_mode<synchronous>, transform_indices = @transform_9, window_bounds = array<i64: 1, 32>}, {transform_indices = @transform_10, window_bounds = array<i64: 1, 8, 32>}]} {
    %c0_i32 = arith.constant 0 : i32
    %0 = arith.cmpi eq, %arg1, %c0_i32 : i32
    %1 = arith.extui %0 : i1 to i32
    %c0_i32_0 = arith.constant 0 : i32
    %2 = arith.cmpi ne, %1, %c0_i32_0 : i32
    scf.if %2 {
      %c0_32 = arith.constant 0 : index
      %c0_33 = arith.constant 0 : index
      %60 = vector.load %arg2[%c0_32, %c0_33] : memref<8x192xf32, #tpu.memory_space<vmem>>, vector<8x192xf32>
      %c0_34 = arith.constant 0 : index
      %c0_35 = arith.constant 0 : index
      %61 = vector.load %arg4[%c0_34, %c0_35] : memref<192x8xf32, #tpu.memory_space<vmem>>, vector<192x8xf32>
      %cst_36 = arith.constant dense<0.000000e+00> : vector<8x8xf32>
      %62 = tpu.matmul %60, %61, %cst_36 {dimension_numbers = #tpu.dot_dimension_numbers<[1], [0], [0], [1], [0, 0, 1, 1], [], []>} : vector<8x192xf32>, vector<192x8xf32>, vector<8x8xf32> -> vector<8x8xf32>
      %c0_37 = arith.constant 0 : index
      %c0_38 = arith.constant 0 : index
      %63 = vector.load %arg5[%c0_37, %c0_38] : memref<1x8xf32, #tpu.memory_space<vmem>>, vector<1x8xf32>
      %64 = vector.broadcast %63 : vector<1x8xf32> to vector<8x8xf32>
      %65 = arith.addf %62, %64 : vector<8x8xf32>
      %c0_39 = arith.constant 0 : index
      %c0_40 = arith.constant 0 : index
      %66 = vector.load %arg3[%c0_39, %c0_40] : memref<8x32xf32, #tpu.memory_space<vmem>>, vector<8x32xf32>
      %c0_41 = arith.constant 0 : index
      %c0_42 = arith.constant 0 : index
      %67 = vector.load %arg6[%c0_41, %c0_42] : memref<32x8xf32, #tpu.memory_space<vmem>>, vector<32x8xf32>
      %cst_43 = arith.constant dense<0.000000e+00> : vector<8x8xf32>
      %68 = tpu.matmul %66, %67, %cst_43 {dimension_numbers = #tpu.dot_dimension_numbers<[1], [0], [0], [1], [0, 0, 1, 1], [], []>} : vector<8x32xf32>, vector<32x8xf32>, vector<8x8xf32> -> vector<8x8xf32>
      %c0_44 = arith.constant 0 : index
      %c0_45 = arith.constant 0 : index
      %69 = vector.load %arg7[%c0_44, %c0_45] : memref<1x8xf32, #tpu.memory_space<vmem>>, vector<1x8xf32>
      %70 = vector.broadcast %69 : vector<1x8xf32> to vector<8x8xf32>
      %71 = arith.addf %68, %70 : vector<8x8xf32>
      %72 = arith.addf %65, %71 : vector<8x8xf32>
      %c0_46 = arith.constant 0 : index
      %c0_47 = arith.constant 0 : index
      %73 = vector.load %arg13[%c0_46, %c0_47] : memref<8x8xf32, #tpu.memory_space<vmem>>, vector<8x8xf32>
      tpu.vector_store %arg13[%c0_46, %c0_47], %72 {strides = array<i32>} : memref<8x8xf32, #tpu.memory_space<vmem>>, vector<8x8xf32>,
    } else {
    }
    %c0 = arith.constant 0 : index
    %c0_1 = arith.constant 0 : index
    %3 = vector.load %arg13[%c0, %c0_1] : memref<8x8xf32, #tpu.memory_space<vmem>>, vector<8x8xf32>
    %c0_2 = arith.constant 0 : index
    %c0_3 = arith.constant 0 : index
    %c0_4 = arith.constant 0 : index
    %4 = vector.load %arg8[%c0_2, %c0_3, %c0_4] : memref<1x8x8xf32, #tpu.memory_space<vmem>>, vector<1x8x8xf32>
    %5 = vector.shape_cast %4 : vector<1x8x8xf32> to vector<8x8xf32>
    %cst = arith.constant dense<0.000000e+00> : vector<8x8xf32>
    %6 = tpu.matmul %3, %5, %cst {dimension_numbers = #tpu.dot_dimension_numbers<[1], [0], [0], [1], [0, 0, 1, 1], [], []>} : vector<8x8xf32>, vector<8x8xf32>, vector<8x8xf32> -> vector<8x8xf32>
    %c0_5 = arith.constant 0 : index
    %c0_6 = arith.constant 0 : index
    %c0_7 = arith.constant 0 : index
    %7 = vector.load %arg9[%c0_5, %c0_6, %c0_7] : memref<1x1x8xf32, #tpu.memory_space<vmem>>, vector<1x1x8xf32>
    %8 = vector.shape_cast %7 : vector<1x1x8xf32> to vector<1x8xf32>
    %9 = vector.broadcast %8 : vector<1x8xf32> to vector<8x8xf32>
    %10 = arith.addf %6, %9 : vector<8x8xf32>
    %cst_8 = arith.constant 5.000000e-01 : f32
    %11 = vector.broadcast %cst_8 : f32 to vector<8x8xf32>
    %12 = arith.mulf %11, %10 : vector<8x8xf32>
    %cst_9 = arith.constant 0.707106769 : f32
    %13 = vector.broadcast %cst_9 : f32 to vector<8x8xf32>
    %14 = arith.mulf %10, %13 : vector<8x8xf32>
    %cst_10 = arith.constant 0.000000e+00 : f32
    %15 = vector.broadcast %cst_10 : f32 to vector<8x8xf32>
    %16 = arith.cmpf oge, %14, %15 : vector<8x8xf32>
    %cst_11 = arith.constant 1.000000e+00 : f32
    %cst_12 = arith.constant -1.000000e+00 : f32
    %17 = vector.broadcast %cst_11 : f32 to vector<8x8xf32>
    %18 = vector.broadcast %cst_12 : f32 to vector<8x8xf32>
    %19 = arith.select %16, %17, %18 : vector<8x8xi1>, vector<8x8xf32>
    %20 = math.absf %14 : vector<8x8xf32>
    %cst_13 = arith.constant 0.327591091 : f32
    %21 = vector.broadcast %cst_13 : f32 to vector<8x8xf32>
    %22 = arith.mulf %21, %20 : vector<8x8xf32>
    %cst_14 = arith.constant 1.000000e+00 : f32
    %23 = vector.broadcast %cst_14 : f32 to vector<8x8xf32>
    %24 = arith.addf %23, %22 : vector<8x8xf32>
    %cst_15 = arith.constant 1.000000e+00 : f32
    %25 = vector.broadcast %cst_15 : f32 to vector<8x8xf32>
    %26 = arith.divf %25, %24 : vector<8x8xf32>
    %cst_16 = arith.constant 1.06140542 : f32
    %27 = vector.broadcast %cst_16 : f32 to vector<8x8xf32>
    %28 = arith.mulf %27, %26 : vector<8x8xf32>
    %cst_17 = arith.constant -1.45315206 : f32
    %29 = vector.broadcast %cst_17 : f32 to vector<8x8xf32>
    %30 = arith.addf %28, %29 : vector<8x8xf32>
    %31 = arith.mulf %30, %26 : vector<8x8xf32>
    %cst_18 = arith.constant 1.42141378 : f32
    %32 = vector.broadcast %cst_18 : f32 to vector<8x8xf32>
    %33 = arith.addf %31, %32 : vector<8x8xf32>
    %34 = arith.mulf %33, %26 : vector<8x8xf32>
    %cst_19 = arith.constant -0.284496725 : f32
    %35 = vector.broadcast %cst_19 : f32 to vector<8x8xf32>
    %36 = arith.addf %34, %35 : vector<8x8xf32>
    %37 = arith.mulf %36, %26 : vector<8x8xf32>
    %cst_20 = arith.constant 0.254829586 : f32
    %38 = vector.broadcast %cst_20 : f32 to vector<8x8xf32>
    %39 = arith.addf %37, %38 : vector<8x8xf32>
    %40 = arith.mulf %39, %26 : vector<8x8xf32>
    %cst_21 = arith.constant 0.000000e+00 : f32
    %41 = vector.broadcast %cst_21 : f32 to vector<8x8xf32>
    %42 = arith.subf %41, %20 : vector<8x8xf32>
    %43 = arith.mulf %42, %20 : vector<8x8xf32>
    %44 = math.exp %43 : vector<8x8xf32>
    %45 = arith.mulf %40, %44 : vector<8x8xf32>
    %cst_22 = arith.constant 1.000000e+00 : f32
    %46 = vector.broadcast %cst_22 : f32 to vector<8x8xf32>
    %47 = arith.subf %46, %45 : vector<8x8xf32>
    %48 = arith.mulf %19, %47 : vector<8x8xf32>
    %cst_23 = arith.constant 1.000000e+00 : f32
    %49 = vector.broadcast %cst_23 : f32 to vector<8x8xf32>
    %50 = arith.addf %49, %48 : vector<8x8xf32>
    %51 = arith.mulf %12, %50 : vector<8x8xf32>
    %c0_24 = arith.constant 0 : index
    %c0_25 = arith.constant 0 : index
    %52 = vector.load %arg10[%c0_24, %c0_25] : memref<8x32xf32, #tpu.memory_space<vmem>>, vector<8x32xf32>
    %cst_26 = arith.constant dense<0.000000e+00> : vector<8x32xf32>
    %53 = tpu.matmul %51, %52, %cst_26 {dimension_numbers = #tpu.dot_dimension_numbers<[1], [0], [0], [1], [0, 0, 1, 1], [], []>} : vector<8x8xf32>, vector<8x32xf32>, vector<8x32xf32> -> vector<8x32xf32>
    %c0_27 = arith.constant 0 : index
    %c0_28 = arith.constant 0 : index
    %54 = vector.load %arg11[%c0_27, %c0_28] : memref<1x32xf32, #tpu.memory_space<vmem>>, vector<1x32xf32>
    %55 = vector.broadcast %54 : vector<1x32xf32> to vector<8x32xf32>
    %56 = arith.addf %53, %55 : vector<8x32xf32>
    %c0_29 = arith.constant 0 : index
    %c0_30 = arith.constant 0 : index
    %c0_31 = arith.constant 0 : index
    %57 = vector.load %arg12[%c0_29, %c0_30, %c0_31] : memref<1x8x32xf32, #tpu.memory_space<vmem>>, vector<1x8x32xf32>
    %58 = vector.shape_cast %57 : vector<1x8x32xf32> to vector<8x32xf32>
    %59 = vector.shape_cast %56 : vector<8x32xf32> to vector<1x8x32xf32>
    tpu.vector_store %arg12[%c0_29, %c0_30, %c0_31], %59 {strides = array<i32>} : memref<1x8x32xf32, #tpu.memory_space<vmem>>, vector<1x8x32xf32>,
    return
  }
  func.func @transform_0(%arg0: i32, %arg1: i32) -> (i32, i32) {
    %c0_i32 = arith.constant 0 : i32
    %c0_i32_0 = arith.constant 0 : i32
    return %arg0, %c0_i32 : i32, i32
  }
  func.func @transform_1(%arg0: i32, %arg1: i32) -> (i32, i32) {
    %c0_i32 = arith.constant 0 : i32
    %c0_i32_0 = arith.constant 0 : i32
    return %arg0, %c0_i32 : i32, i32
  }
  func.func @transform_2(%arg0: i32, %arg1: i32) -> (i32, i32) {
    %c0_i32 = arith.constant 0 : i32
    %c0_i32_0 = arith.constant 0 : i32
    %c0_i32_1 = arith.constant 0 : i32
    return %c0_i32, %c0_i32_0 : i32, i32
  }
  func.func @transform_3(%arg0: i32, %arg1: i32) -> (i32, i32) {
    %c0_i32 = arith.constant 0 : i32
    %c0_i32_0 = arith.constant 0 : i32
    %c0_i32_1 = arith.constant 0 : i32
    return %c0_i32, %c0_i32_0 : i32, i32
  }
  func.func @transform_4(%arg0: i32, %arg1: i32) -> (i32, i32) {
    %c0_i32 = arith.constant 0 : i32
    %c0_i32_0 = arith.constant 0 : i32
    %c0_i32_1 = arith.constant 0 : i32
    return %c0_i32, %c0_i32_0 : i32, i32
  }
  func.func @transform_5(%arg0: i32, %arg1: i32) -> (i32, i32) {
    %c0_i32 = arith.constant 0 : i32
    %c0_i32_0 = arith.constant 0 : i32
    %c0_i32_1 = arith.constant 0 : i32
    return %c0_i32, %c0_i32_0 : i32, i32
  }
  func.func @transform_6(%arg0: i32, %arg1: i32) -> (i32, i32, i32) {
    %c0_i32 = arith.constant 0 : i32
    %c0_i32_0 = arith.constant 0 : i32
    %c0_i32_1 = arith.constant 0 : i32
    return %arg1, %c0_i32, %c0_i32_0 : i32, i32, i32
  }
  func.func @transform_7(%arg0: i32, %arg1: i32) -> (i32, i32, i32) {
    %c0_i32 = arith.constant 0 : i32
    %c0_i32_0 = arith.constant 0 : i32
    %c0_i32_1 = arith.constant 0 : i32
    return %arg1, %c0_i32, %c0_i32_0 : i32, i32, i32
  }
  func.func @transform_8(%arg0: i32, %arg1: i32) -> (i32, i32) {
    %c0_i32 = arith.constant 0 : i32
    %c0_i32_0 = arith.constant 0 : i32
    %c0_i32_1 = arith.constant 0 : i32
    return %c0_i32, %c0_i32_0 : i32, i32
  }
  func.func @transform_9(%arg0: i32, %arg1: i32) -> (i32, i32) {
    %c0_i32 = arith.constant 0 : i32
    %c0_i32_0 = arith.constant 0 : i32
    %c0_i32_1 = arith.constant 0 : i32
    return %c0_i32, %c0_i32_0 : i32, i32
  }
  func.func @transform_10(%arg0: i32, %arg1: i32) -> (i32, i32, i32) {
    %c0_i32 = arith.constant 0 : i32
    %c0_i32_0 = arith.constant 0 : i32
    return %arg1, %arg0, %c0_i32 : i32, i32, i32
  }
}

</mosaic_0001>

<llo_original>
// kernel: tpu_custom_call.1
$region0: #{tpu_custom_call.1}
  #allocation0 [shape = 'u32[]', space=smem, size = 0x4, offset = 0x4, fixed_abs, tag = 'smem constant byte address 0x4 - core index']
  #allocation1 [shape = 'u32[144,128]{1,0:T(1,128)}', space=vmem, size = 0x12000, scoped, tag = 'internal scratch']
  #allocation2 [shape = 'f32[8,8]{1,0:T(8,128)}', space=vmem, size = 0x1000, scoped, tag = 'scratch operand']
  %s0 = inlined_call_operand.vmem [shape: f32[8,192], index: 0, kind: input, shape index: {}]
  %s1 = inlined_call_operand.vmem [shape: f32[8,32], index: 1, kind: input, shape index: {}]
  %s2 = inlined_call_operand.vmem [shape: f32[192,8], index: 2, kind: input, shape index: {}]
  %s3 = inlined_call_operand.vmem [shape: f32[1,8], index: 3, kind: input, shape index: {}]
  %s4 = inlined_call_operand.vmem [shape: f32[32,8], index: 4, kind: input, shape index: {}]
  %s5 = inlined_call_operand.vmem [shape: f32[1,8], index: 5, kind: input, shape index: {}]
  %s6 = inlined_call_operand.vmem [shape: f32[2,8,8], index: 6, kind: input, shape index: {}]
  %s7 = inlined_call_operand.vmem [shape: f32[2,1,8], index: 7, kind: input, shape index: {}]
  %s8 = inlined_call_operand.vmem [shape: f32[8,32], index: 8, kind: input, shape index: {}]
  %s9 = inlined_call_operand.vmem [shape: f32[1,32], index: 9, kind: input, shape index: {}]
  %s10 = inlined_call_operand.hbm [shape: f32[2,8,32], index: 10, kind: output, shape index: {}]
  %s11 = sld [smem:[#allocation0]]
  $region77: #{tpu_custom_call.1} parent=0
    _
  %s13 = ssub.s32 1, %s11
  %s14 = scalar_select 0, %s13, %s11
  $region1: #{tpu_custom_call.1} parent=0
    #allocation3 [shape = 'u8[8192]{0}', space=vmem, size = 0x2000, scoped, tag = 'output window, operand 0']
    #allocation4 [shape = 's32[2]{0}', space=sflag, size = 0x8, scoped, tag = 'scoped memory for tpu_custom_call.1']
    %15 = vsyncpa [#allocation4], 0
    %s16 = scalar_lea.sflag [#allocation4], 1
    %17 = vsyncpa %s16, 0
    loop: start=0, step=1, limit=4
    $region2: #{tpu_custom_call.1} parent=1 // loop_pre_header
      _
    $region3: #{tpu_custom_call.1} parent=1 // loop_header
      %s19 = sphi 0, %s23
      %p20 = scmp.ge.s32.totalorder %s19, 4
      %s26 = sphi 0, %s38
      %s27 = sphi 0, %s34
      %s28 = sphi 0, %s26
      %s29 = sphi 0, %s27
      %s30 = sphi 0, %s28
      %s31 = sphi 0, %s29
      %s41 = sphi 0, %s43
      %s44 = sphi 0, %s41
      %s45 = sphi 0, %s44
      %s61 = sphi 0, %s45
      %s67 = sphi 0, %s69
      %s70 = sphi 0, %s67
      %s71 = sphi 0, %s70
      %s87 = sphi 0, %s71
      %s91 = sphi 0, %s91
      %s93 = sphi 0, %s91
      %s94 = sphi 0, %s93
      %s108 = sphi 0, %s94
      %s112 = sphi 0, %s112
      %s114 = sphi 0, %s112
      %s115 = sphi 0, %s114
      %s129 = sphi 0, %s115
      %s133 = sphi 0, %s133
      %s135 = sphi 0, %s133
      %s136 = sphi 0, %s135
      %s150 = sphi 0, %s136
      %s154 = sphi 0, %s154
      %s156 = sphi 0, %s154
      %s157 = sphi 0, %s156
      %s171 = sphi 0, %s157
      %s177 = sphi 0, %s179
      %s180 = sphi 0, %s177
      %s181 = sphi 0, %s180
      %s197 = sphi 0, %s181
      %s203 = sphi 0, %s205
      %s206 = sphi 0, %s203
      %s207 = sphi 0, %s206
      %s223 = sphi 0, %s207
      %s227 = sphi 0, %s227
      %s229 = sphi 0, %s227
      %s230 = sphi 0, %s229
      %s244 = sphi 0, %s230
      %s248 = sphi 0, %s248
      %s250 = sphi 0, %s248
      %s251 = sphi 0, %s250
      %s265 = sphi 0, %s251
      %s273 = sphi 0, %s275
      %s276 = sphi 0, %s273
      %s277 = sphi 0, %s276
      %s293 = sphi 0, %s277
    $region4: #{tpu_custom_call.1} parent=1 // loop_header_branch
      %22 = sbr.rel (%p20) target = $region8
    $region5: #{tpu_custom_call.1} parent=1 // loop_body
      %s24 = ssub.s32 %s19, 1
      %s25 = ssub.s32 %s19, 2
      %s32 = sadd.s32 1, %s27
      %p33 = scmp.ge.s32.totalorder %s32, 2
      %s34 = scalar_select %p33, 0, %s32
      %s35 = sadd.s32 1, %s26
      %s36 = scalar_select %p33, %s35, %s26
      %p37 = scmp.ge.s32.totalorder %s36, 1
      %s38 = scalar_select %p37, 0, %s36
      %s39 = ssub.s32 %s26, %s38
      %p40 = scmp.eq.s32.totalorder %s39, 0
      %s42 = sadd.s32 %s41, 1
      %s43 = scalar_select %p40, %s41, %s42
      %p46 = pneg %p40
      %p47 = scmp.eq.s32.totalorder %s19, 1
      %p48 = por %p46, %p47
      %p49 = scmp.ne.s32.totalorder %s41, %s44
      %p50 = scmp.eq.s32.totalorder %s19, 0
      %p51 = por %p49, %p50
      %p52 = scmp.ne.s32.totalorder %s41, %s44
      %p53 = scmp.eq.s32.totalorder %s24, 1
      %p54 = por %p52, %p53
      %p55 = scmp.ne.s32.totalorder %s44, %s45
      %p56 = scmp.eq.s32.totalorder %s24, 0
      %p57 = por %p55, %p56
      %p58 = scmp.ne.s32.totalorder %s44, %s45
      %p59 = scmp.eq.s32.totalorder %s25, 1
      %p60 = por %p58, %p59
      %p62 = scmp.ne.s32.totalorder %s45, %s61
      %p63 = scmp.eq.s32.totalorder %s25, 0
      %p64 = por %p62, %p63
      %s65 = ssub.s32 %s26, %s38
      %p66 = scmp.eq.s32.totalorder %s65, 0
      %s68 = sadd.s32 %s67, 1
      %s69 = scalar_select %p66, %s67, %s68
      %p72 = pneg %p66
      %p73 = scmp.eq.s32.totalorder %s19, 1
      %p74 = por %p72, %p73
      %p75 = scmp.ne.s32.totalorder %s67, %s70
      %p76 = scmp.eq.s32.totalorder %s19, 0
      %p77 = por %p75, %p76
      %p78 = scmp.ne.s32.totalorder %s67, %s70
      %p79 = scmp.eq.s32.totalorder %s24, 1
      %p80 = por %p78, %p79
      %p81 = scmp.ne.s32.totalorder %s70, %s71
      %p82 = scmp.eq.s32.totalorder %s24, 0
      %p83 = por %p81, %p82
      %p84 = scmp.ne.s32.totalorder %s70, %s71
      %p85 = scmp.eq.s32.totalorder %s25, 1
      %p86 = por %p84, %p85
      %p88 = scmp.ne.s32.totalorder %s71, %s87
      %p89 = scmp.eq.s32.totalorder %s25, 0
      %p90 = por %p88, %p89
      %s92 = sadd.s32 %s91, 1
      %p95 = scmp.eq.s32.totalorder %s19, 1
      %p96 = scmp.ne.s32.totalorder %s91, %s93
      %p97 = scmp.eq.s32.totalorder %s19, 0
      %p98 = por %p96, %p97
      %p99 = scmp.ne.s32.totalorder %s91, %s93
      %p100 = scmp.eq.s32.totalorder %s24, 1
      %p101 = por %p99, %p100
      %p102 = scmp.ne.s32.totalorder %s93, %s94
      %p103 = scmp.eq.s32.totalorder %s24, 0
      %p104 = por %p102, %p103
      %p105 = scmp.ne.s32.totalorder %s93, %s94
      %p106 = scmp.eq.s32.totalorder %s25, 1
      %p107 = por %p105, %p106
      %p109 = scmp.ne.s32.totalorder %s94, %s108
      %p110 = scmp.eq.s32.totalorder %s25, 0
      %p111 = por %p109, %p110
      %s113 = sadd.s32 %s112, 1
      %p116 = scmp.eq.s32.totalorder %s19, 1
      %p117 = scmp.ne.s32.totalorder %s112, %s114
      %p118 = scmp.eq.s32.totalorder %s19, 0
      %p119 = por %p117, %p118
      %p120 = scmp.ne.s32.totalorder %s112, %s114
      %p121 = scmp.eq.s32.totalorder %s24, 1
      %p122 = por %p120, %p121
      %p123 = scmp.ne.s32.totalorder %s114, %s115
      %p124 = scmp.eq.s32.totalorder %s24, 0
      %p125 = por %p123, %p124
      %p126 = scmp.ne.s32.totalorder %s114, %s115
      %p127 = scmp.eq.s32.totalorder %s25, 1
      %p128 = por %p126, %p127
      %p130 = scmp.ne.s32.totalorder %s115, %s129
      %p131 = scmp.eq.s32.totalorder %s25, 0
      %p132 = por %p130, %p131
      %s134 = sadd.s32 %s133, 1
      %p137 = scmp.eq.s32.totalorder %s19, 1
      %p138 = scmp.ne.s32.totalorder %s133, %s135
      %p139 = scmp.eq.s32.totalorder %s19, 0
      %p140 = por %p138, %p139
      %p141 = scmp.ne.s32.totalorder %s133, %s135
      %p142 = scmp.eq.s32.totalorder %s24, 1
      %p143 = por %p141, %p142
      %p144 = scmp.ne.s32.totalorder %s135, %s136
      %p145 = scmp.eq.s32.totalorder %s24, 0
      %p146 = por %p144, %p145
      %p147 = scmp.ne.s32.totalorder %s135, %s136
      %p148 = scmp.eq.s32.totalorder %s25, 1
      %p149 = por %p147, %p148
      %p151 = scmp.ne.s32.totalorder %s136, %s150
      %p152 = scmp.eq.s32.totalorder %s25, 0
      %p153 = por %p151, %p152
      %s155 = sadd.s32 %s154, 1
      %p158 = scmp.eq.s32.totalorder %s19, 1
      %p159 = scmp.ne.s32.totalorder %s154, %s156
      %p160 = scmp.eq.s32.totalorder %s19, 0
      %p161 = por %p159, %p160
      %p162 = scmp.ne.s32.totalorder %s154, %s156
      %p163 = scmp.eq.s32.totalorder %s24, 1
      %p164 = por %p162, %p163
      %p165 = scmp.ne.s32.totalorder %s156, %s157
      %p166 = scmp.eq.s32.totalorder %s24, 0
      %p167 = por %p165, %p166
      %p168 = scmp.ne.s32.totalorder %s156, %s157
      %p169 = scmp.eq.s32.totalorder %s25, 1
      %p170 = por %p168, %p169
      %p172 = scmp.ne.s32.totalorder %s157, %s171
      %p173 = scmp.eq.s32.totalorder %s25, 0
      %p174 = por %p172, %p173
      %s175 = ssub.s32 %s27, %s34
      %p176 = scmp.eq.s32.totalorder %s175, 0
      %s178 = sadd.s32 %s177, 1
      %s179 = scalar_select %p176, %s177, %s178
      %p182 = pneg %p176
      %p183 = scmp.eq.s32.totalorder %s19, 1
      %p184 = por %p182, %p183
      %p185 = scmp.ne.s32.totalorder %s177, %s180
      %p186 = scmp.eq.s32.totalorder %s19, 0
      %p187 = por %p185, %p186
      %p188 = scmp.ne.s32.totalorder %s177, %s180
      %p189 = scmp.eq.s32.totalorder %s24, 1
      %p190 = por %p188, %p189
      %p191 = scmp.ne.s32.totalorder %s180, %s181
      %p192 = scmp.eq.s32.totalorder %s24, 0
      %p193 = por %p191, %p192
      %p194 = scmp.ne.s32.totalorder %s180, %s181
      %p195 = scmp.eq.s32.totalorder %s25, 1
      %p196 = por %p194, %p195
      %p198 = scmp.ne.s32.totalorder %s181, %s197
      %p199 = scmp.eq.s32.totalorder %s25, 0
      %p200 = por %p198, %p199
      %s201 = ssub.s32 %s27, %s34
      %p202 = scmp.eq.s32.totalorder %s201, 0
      %s204 = sadd.s32 %s203, 1
      %s205 = scalar_select %p202, %s203, %s204
      %p208 = pneg %p202
      %p209 = scmp.eq.s32.totalorder %s19, 1
      %p210 = por %p208, %p209
      %p211 = scmp.ne.s32.totalorder %s203, %s206
      %p212 = scmp.eq.s32.totalorder %s19, 0
      %p213 = por %p211, %p212
      %p214 = scmp.ne.s32.totalorder %s203, %s206
      %p215 = scmp.eq.s32.totalorder %s24, 1
      %p216 = por %p214, %p215
      %p217 = scmp.ne.s32.totalorder %s206, %s207
      %p218 = scmp.eq.s32.totalorder %s24, 0
      %p219 = por %p217, %p218
      %p220 = scmp.ne.s32.totalorder %s206, %s207
      %p221 = scmp.eq.s32.totalorder %s25, 1
      %p222 = por %p220, %p221
      %p224 = scmp.ne.s32.totalorder %s207, %s223
      %p225 = scmp.eq.s32.totalorder %s25, 0
      %p226 = por %p224, %p225
      %s228 = sadd.s32 %s227, 1
      %p231 = scmp.eq.s32.totalorder %s19, 1
      %p232 = scmp.ne.s32.totalorder %s227, %s229
      %p233 = scmp.eq.s32.totalorder %s19, 0
      %p234 = por %p232, %p233
      %p235 = scmp.ne.s32.totalorder %s227, %s229
      %p236 = scmp.eq.s32.totalorder %s24, 1
      %p237 = por %p235, %p236
      %p238 = scmp.ne.s32.totalorder %s229, %s230
      %p239 = scmp.eq.s32.totalorder %s24, 0
      %p240 = por %p238, %p239
      %p241 = scmp.ne.s32.totalorder %s229, %s230
      %p242 = scmp.eq.s32.totalorder %s25, 1
      %p243 = por %p241, %p242
      %p245 = scmp.ne.s32.totalorder %s230, %s244
      %p246 = scmp.eq.s32.totalorder %s25, 0
      %p247 = por %p245, %p246
      %s249 = sadd.s32 %s248, 1
      %p252 = scmp.eq.s32.totalorder %s19, 1
      %p253 = scmp.ne.s32.totalorder %s248, %s250
      %p254 = scmp.eq.s32.totalorder %s19, 0
      %p255 = por %p253, %p254
      %p256 = scmp.ne.s32.totalorder %s248, %s250
      %p257 = scmp.eq.s32.totalorder %s24, 1
      %p258 = por %p256, %p257
      %p259 = scmp.ne.s32.totalorder %s250, %s251
      %p260 = scmp.eq.s32.totalorder %s24, 0
      %p261 = por %p259, %p260
      %p262 = scmp.ne.s32.totalorder %s250, %s251
      %p263 = scmp.eq.s32.totalorder %s25, 1
      %p264 = por %p262, %p263
      %p266 = scmp.ne.s32.totalorder %s251, %s265
      %p267 = scmp.eq.s32.totalorder %s25, 0
      %p268 = por %p266, %p267
      %s269 = ssub.s32 %s27, %s34
      %s270 = ssub.s32 %s26, %s38
      %s271 = sor.u32 %s269, %s270
      %p272 = scmp.eq.s32.totalorder %s271, 0
      %s274 = sadd.s32 %s273, 1
      %s275 = scalar_select %p272, %s273, %s274
      %p278 = pneg %p272
      %p279 = scmp.eq.s32.totalorder %s19, 1
      %p280 = por %p278, %p279
      %p281 = scmp.ne.s32.totalorder %s273, %s276
      %p282 = scmp.eq.s32.totalorder %s19, 0
      %p283 = por %p281, %p282
      %p284 = scmp.ne.s32.totalorder %s273, %s276
      %p285 = scmp.eq.s32.totalorder %s24, 1
      %p286 = por %p284, %p285
      %p287 = scmp.ne.s32.totalorder %s276, %s277
      %p288 = scmp.eq.s32.totalorder %s24, 0
      %p289 = por %p287, %p288
      %p290 = scmp.ne.s32.totalorder %s276, %s277
      %p291 = scmp.eq.s32.totalorder %s25, 1
      %p292 = por %p290, %p291
      %p294 = scmp.ne.s32.totalorder %s277, %s293
      %p295 = scmp.eq.s32.totalorder %s25, 0
      %p296 = por %p294, %p295
      %p297 = scmp.le.s32.totalorder 1, %s19
      %p298 = scmp.lt.s32.totalorder %s19, 3
      %p299 = pnand %p297, %p298
      %p300 = pneg %p299
      // Predicated region
      $region9: #{tpu_custom_call.1} parent=5 // pred_check
        _
      $region10: #{tpu_custom_call.1} parent=5 // pred_check_branch
        %302 = sbr.rel (%p299) target = $region12
      $region11: #{tpu_custom_call.1} parent=5 // pred_region
        %s303 = ssub.s32 %s19, 1
        // Predicated region
        $region13: #{tpu_custom_call.1} parent=11 // pred_check
          %p304 = pneg %p57
        $region14: #{tpu_custom_call.1} parent=11 // pred_check_branch
          %306 = sbr.rel (%p304) target = $region16
        $region15: #{tpu_custom_call.1} parent=11 // pred_region
          %p307 = scmp.lt.s32.totalorder %s28, 0
          %s308 = scalar_select %p307, %s28, 0
          %s309 = smul.addr %s308, 2
          %s310 = smul.addr %s309, 8
          %s311 = scalar_lea.vmem %s0, %s310
        $region16: #{tpu_custom_call.1} parent=11 // pred_fallthru
          _
        // Predicated region
        $region17: #{tpu_custom_call.1} parent=11 // pred_check
          %p312 = pneg %p83
        $region18: #{tpu_custom_call.1} parent=11 // pred_check_branch
          %314 = sbr.rel (%p312) target = $region20
        $region19: #{tpu_custom_call.1} parent=11 // pred_region
          %p315 = scmp.lt.s32.totalorder %s28, 0
          %s316 = scalar_select %p315, %s28, 0
          %s317 = smul.addr %s316, 8
          %s318 = scalar_lea.vmem %s1, %s317
        $region20: #{tpu_custom_call.1} parent=11 // pred_fallthru
          _
        // Predicated region
        $region21: #{tpu_custom_call.1} parent=11 // pred_check
          %p319 = pneg %p104
        $region22: #{tpu_custom_call.1} parent=11 // pred_check_branch
          %321 = sbr.rel (%p319) target = $region24
        $region23: #{tpu_custom_call.1} parent=11 // pred_region
          _
        $region24: #{tpu_custom_call.1} parent=11 // pred_fallthru
          _
        // Predicated region
        $region25: #{tpu_custom_call.1} parent=11 // pred_check
          %p322 = pneg %p125
        $region26: #{tpu_custom_call.1} parent=11 // pred_check_branch
          %324 = sbr.rel (%p322) target = $region28
        $region27: #{tpu_custom_call.1} parent=11 // pred_region
          _
        $region28: #{tpu_custom_call.1} parent=11 // pred_fallthru
          _
        // Predicated region
        $region29: #{tpu_custom_call.1} parent=11 // pred_check
          %p325 = pneg %p146
        $region30: #{tpu_custom_call.1} parent=11 // pred_check_branch
          %327 = sbr.rel (%p325) target = $region32
        $region31: #{tpu_custom_call.1} parent=11 // pred_region
          _
        $region32: #{tpu_custom_call.1} parent=11 // pred_fallthru
          _
        // Predicated region
        $region33: #{tpu_custom_call.1} parent=11 // pred_check
          %p328 = pneg %p167
        $region34: #{tpu_custom_call.1} parent=11 // pred_check_branch
          %330 = sbr.rel (%p328) target = $region36
        $region35: #{tpu_custom_call.1} parent=11 // pred_region
          _
        $region36: #{tpu_custom_call.1} parent=11 // pred_fallthru
          _
        // Predicated region
        $region37: #{tpu_custom_call.1} parent=11 // pred_check
          %p331 = pneg %p240
        $region38: #{tpu_custom_call.1} parent=11 // pred_check_branch
          %333 = sbr.rel (%p331) target = $region40
        $region39: #{tpu_custom_call.1} parent=11 // pred_region
          _
        $region40: #{tpu_custom_call.1} parent=11 // pred_fallthru
          _
        // Predicated region
        $region41: #{tpu_custom_call.1} parent=11 // pred_check
          %p334 = pneg %p261
        $region42: #{tpu_custom_call.1} parent=11 // pred_check_branch
          %336 = sbr.rel (%p334) target = $region44
        $region43: #{tpu_custom_call.1} parent=11 // pred_region
          _
        $region44: #{tpu_custom_call.1} parent=11 // pred_fallthru
          _
      $region12: #{tpu_custom_call.1} parent=5 // pred_fallthru
        _
      %p337 = scmp.lt.s32.totalorder %s19, 2
      // Predicated region
      $region45: #{tpu_custom_call.1} parent=5 // pred_check
        %p338 = pneg %p337
      $region46: #{tpu_custom_call.1} parent=5 // pred_check_branch
        %340 = sbr.rel (%p338) target = $region48
      $region47: #{tpu_custom_call.1} parent=5 // pred_region
        // Predicated region
        $region49: #{tpu_custom_call.1} parent=47 // pred_check
          %p341 = pneg %p187
        $region50: #{tpu_custom_call.1} parent=47 // pred_check_branch
          %343 = sbr.rel (%p341) target = $region52
        $region51: #{tpu_custom_call.1} parent=47 // pred_region
          %p344 = scmp.lt.s32.totalorder %s27, 1
          %s345 = scalar_select %p344, %s27, 1
          %s346 = smul.addr %s345, 8
          %s347 = scalar_lea.vmem %s6, %s346
        $region52: #{tpu_custom_call.1} parent=47 // pred_fallthru
          _
        // Predicated region
        $region53: #{tpu_custom_call.1} parent=47 // pred_check
          %p348 = pneg %p213
        $region54: #{tpu_custom_call.1} parent=47 // pred_check_branch
          %350 = sbr.rel (%p348) target = $region56
        $region55: #{tpu_custom_call.1} parent=47 // pred_region
          %p351 = scmp.lt.s32.totalorder %s27, 1
          %s352 = scalar_select %p351, %s27, 1
          %s353 = scalar_lea.vmem %s7, %s352
        $region56: #{tpu_custom_call.1} parent=47 // pred_fallthru
          _
      $region48: #{tpu_custom_call.1} parent=5 // pred_fallthru
        _
      %p354 = scmp.le.s32.totalorder 1, %s19
      %p355 = scmp.lt.s32.totalorder %s19, 3
      %p356 = pnand %p354, %p355
      %p357 = pneg %p356
      // Predicated region
      $region57: #{tpu_custom_call.1} parent=5 // pred_check
        _
      $region58: #{tpu_custom_call.1} parent=5 // pred_check_branch
        %359 = sbr.rel (%p356) target = $region60
      $region59: #{tpu_custom_call.1} parent=5 // pred_region
        %s360 = ssub.s32 %s19, 1
        %p361 = scmp.lt.s32.totalorder %s28, 0
        %s362 = scalar_select %p361, %s28, 0
        %s363 = smul.addr %s362, 2
        %s364 = smul.addr %s363, 8
        %s365 = scalar_lea.vmem %s0, %s364
        %p366 = pneg %p57
        %p367 = pneg %p54
        %p368 = scmp.lt.s32.totalorder %s28, 0
        %s369 = scalar_select %p368, %s28, 0
        %s370 = smul.addr %s369, 8
        %s371 = scalar_lea.vmem %s1, %s370
        %p372 = pneg %p83
        %p373 = pneg %p80
        %p374 = pneg %p104
        %p375 = pneg %p101
        %p376 = pneg %p125
        %p377 = pneg %p122
        %p378 = pneg %p146
        %p379 = pneg %p143
        %p380 = pneg %p167
        %p381 = pneg %p164
        %p382 = scmp.lt.s32.totalorder %s29, 1
        %s383 = scalar_select %p382, %s29, 1
        %s384 = smul.addr %s383, 8
        %s385 = scalar_lea.vmem %s6, %s384
        %p386 = pneg %p193
        %p387 = pneg %p190
        %p388 = scmp.lt.s32.totalorder %s29, 1
        %s389 = scalar_select %p388, %s29, 1
        %s390 = scalar_lea.vmem %s7, %s389
        %p391 = pneg %p219
        %p392 = pneg %p216
        %p393 = pneg %p240
        %p394 = pneg %p237
        %p395 = pneg %p261
        %p396 = pneg %p258
        %p397 = pneg %p289
        %p398 = pneg %p286
        %s399 = sand.u32 %s276, 1
        %s400 = scalar_lea.sflag [#allocation4], %s399
        %s401 = sand.u32 %s276, 1
        %s402 = smul.addr %s401, 8
        %s403 = scalar_lea.vmem [#allocation3], %s402
        %p404 = scmp.lt.s32.totalorder %s28, 0
        %s405 = scalar_select %p404, %s28, 0
        %s406 = smul.addr %s405, 2
        %s407 = smul.addr %s406, 8
        %s408 = scalar_lea.vmem %s0, %s407
        %p409 = scmp.lt.s32.totalorder %s28, 0
        %s410 = scalar_select %p409, %s28, 0
        %s411 = smul.addr %s410, 8
        %s412 = scalar_lea.vmem %s1, %s411
        %p413 = scmp.lt.s32.totalorder %s29, 1
        %s414 = scalar_select %p413, %s29, 1
        %s415 = smul.addr %s414, 8
        %s416 = scalar_lea.vmem %s6, %s415
        %p417 = scmp.lt.s32.totalorder %s29, 1
        %s418 = scalar_select %p417, %s29, 1
        %s419 = scalar_lea.vmem %s7, %s418
        %p420 = scmp.eq.s32.totalorder %s29, 0
        // Predicated region
        $region61: #{tpu_custom_call.1} parent=59 // pred_check
          %p421 = pneg %p420
        $region62: #{tpu_custom_call.1} parent=59 // pred_check_branch
          %423 = sbr.rel (%p421) target = $region64
        $region63: #{tpu_custom_call.1} parent=59 // pred_region
          %v424 = vld [vmem:[%s408] sm:$0xff]
          %v425 = vld [vmem:[%s408 + $0x8] sm:$0xff]
          %v426 = vld [vmem:[%s2] sm:$0xff]
          %v427 = vld [vmem:[%s2 + $0x8] sm:$0xff]
          %v428 = vld [vmem:[%s2 + $0x10] sm:$0xff]
          %v429 = vld [vmem:[%s2 + $0x18] sm:$0xff]
          %v430 = vld [vmem:[%s2 + $0x20] sm:$0xff]
          %v431 = vld [vmem:[%s2 + $0x28] sm:$0xff]
          %v432 = vld [vmem:[%s2 + $0x30] sm:$0xff]
          %v433 = vld [vmem:[%s2 + $0x38] sm:$0xff]
          %v434 = vld [vmem:[%s2 + $0x40] sm:$0xff]
          %v435 = vld [vmem:[%s2 + $0x48] sm:$0xff]
          %v436 = vld [vmem:[%s2 + $0x50] sm:$0xff]
          %v437 = vld [vmem:[%s2 + $0x58] sm:$0xff]
          %v438 = vld [vmem:[%s2 + $0x60] sm:$0xff]
          %v439 = vld [vmem:[%s2 + $0x68] sm:$0xff]
          %v440 = vld [vmem:[%s2 + $0x70] sm:$0xff]
          %v441 = vld [vmem:[%s2 + $0x78] sm:$0xff]
          %v442 = vld [vmem:[%s2 + $0x80] sm:$0xff]
          %v443 = vld [vmem:[%s2 + $0x88] sm:$0xff]
          %v444 = vld [vmem:[%s2 + $0x90] sm:$0xff]
          %v445 = vld [vmem:[%s2 + $0x98] sm:$0xff]
          %v446 = vld [vmem:[%s2 + $0xa0] sm:$0xff]
          %v447 = vld [vmem:[%s2 + $0xa8] sm:$0xff]
          %v448 = vld [vmem:[%s2 + $0xb0] sm:$0xff]
          %v449 = vld [vmem:[%s2 + $0xb8] sm:$0xff]
          %v450 = vld [vmem:[%s3] sm:$0x1]
          %v452 = vlaneseq
          %v453 = vshrl.u32 %v452, 7
          %v454 = vsub.s32 0, %v453
          %v455 = vrot.slane %v450, %v454
          %vm457 = vcmask 523264
          %v459 = vsel %vm457, %v425, 0
          %461 = vmatprep.subr.mxu0 0.0
          %462 = vmatpush1.msra.mxu0 %v426
          %463 = vmatprep.subr.mxu0 0.0
          %464 = vmatpush1.msra.mxu0 %v427
          %465 = vmatprep.subr.mxu0 0.0
          %466 = vmatpush1.msra.mxu0 %v428
          %467 = vmatprep.subr.mxu0 0.0
          %468 = vmatpush1.msra.mxu0 %v429
          %469 = vmatprep.subr.mxu0 0.0
          %470 = vmatpush1.msra.mxu0 %v430
          %471 = vmatprep.subr.mxu0 0.0
          %472 = vmatpush1.msra.mxu0 %v431
          %473 = vmatprep.subr.mxu0 0.0
          %474 = vmatpush1.msra.mxu0 %v432
          %475 = vmatprep.subr.mxu0 0.0
          %476 = vmatpush1.msra.mxu0 %v433
          %477 = vmatprep.subr.mxu0 0.0
          %478 = vmatpush1.msra.mxu0 %v434
          %479 = vmatprep.subr.mxu0 0.0
          %480 = vmatpush1.msra.mxu0 %v435
          %481 = vmatprep.subr.mxu0 0.0
          %482 = vmatpush1.msra.mxu0 %v436
          %483 = vmatprep.subr.mxu0 0.0
          %484 = vmatpush1.msra.mxu0 %v437
          %485 = vmatprep.subr.mxu0 0.0
          %486 = vmatpush1.msra.mxu0 %v438
          %487 = vmatprep.subr.mxu0 0.0
          %488 = vmatpush1.msra.mxu0 %v439
          %489 = vmatprep.subr.mxu0 0.0
          %490 = vmatpush1.msra.mxu0 %v440
          %491 = vmatprep.subr.mxu0 0.0
          %492 = vmatpush1.msra.mxu0 %v441
          %493 = vmatprep.subr.mxu0 0.0
          %494 = vmatpush1.msra.mxu0 %v442
          %495 = vmatprep.subr.mxu0 0.0
          %496 = vmatpush1.msra.mxu0 %v443
          %497 = vmatprep.subr.mxu0 0.0
          %498 = vmatpush1.msra.mxu0 %v444
          %499 = vmatprep.subr.mxu0 0.0
          %500 = vmatpush1.msra.mxu0 %v445
          %501 = vmatprep.subr.mxu0 0.0
          %502 = vmatpush1.msra.mxu0 %v446
          %503 = vmatprep.subr.mxu0 0.0
          %504 = vmatpush1.msra.mxu0 %v447
          %505 = vmatprep.subr.mxu0 0.0
          %506 = vmatpush1.msra.mxu0 %v448
          %507 = vmatprep.subr.mxu0 0.0
          %508 = vmatpush1.msra.mxu0 %v449
          %509 = vmatprep.subr.mxu0 0.0
          %510 = vmatpush1.msra.mxu0 0.0
          %511 = vmatprep.subr.mxu0 0.0
          %512 = vmatpush1.msra.mxu0 0.0
          %513 = vmatprep.subr.mxu0 0.0
          %514 = vmatpush1.msra.mxu0 0.0
          %515 = vmatprep.subr.mxu0 0.0
          %516 = vmatpush1.msra.mxu0 0.0
          %517 = vmatprep.subr.mxu0 0.0
          %518 = vmatpush1.msra.mxu0 0.0
          %519 = vmatprep.subr.mxu0 0.0
          %520 = vmatpush1.msra.mxu0 0.0
          %521 = vmatprep.subr.mxu0 0.0
          %522 = vmatpush1.msra.mxu0 0.0
          %523 = vmatprep.subr.mxu0 0.0
          %524 = vmatpush1.msra.mxu0 0.0
          %525 = vmatprep.mubr.f32.mxu0 %v459
          %526 = vmatmul.mubr.f32.gmra.mrb[0].mxu0 %v424
          %v527 = vpop.f32.mrb[0].mxu0
          %v528 = vadd.f32 %v455, %v527
          %v529 = vpop.f32.mrb[0].mxu0
          %530 = vdwg.mxu0
          %v531 = vld [vmem:[%s412] sm:$0xff]
          %v532 = vld [vmem:[%s4] sm:$0xff]
          %v533 = vld [vmem:[%s4 + $0x8] sm:$0xff]
          %v534 = vld [vmem:[%s4 + $0x10] sm:$0xff]
          %v535 = vld [vmem:[%s4 + $0x18] sm:$0xff]
          %v536 = vld [vmem:[%s5] sm:$0x1]
          %v538 = vlaneseq
          %v539 = vshrl.u32 %v538, 7
          %v540 = vsub.s32 0, %v539
          %v541 = vrot.slane %v536, %v540
          %vm543 = vcmask 261120
          %v545 = vsel %vm543, %v531, 0
          %547 = vmatprep.subr.mxu0 0.0
          %548 = vmatpush1.msra.mxu0 %v532
          %549 = vmatprep.subr.mxu0 0.0
          %550 = vmatpush1.msra.mxu0 %v533
          %551 = vmatprep.subr.mxu0 0.0
          %552 = vmatpush1.msra.mxu0 %v534
          %553 = vmatprep.subr.mxu0 0.0
          %554 = vmatpush1.msra.mxu0 %v535
          %555 = vmatprep.subr.mxu0 0.0
          %556 = vmatpush1.msra.mxu0 0.0
          %557 = vmatprep.subr.mxu0 0.0
          %558 = vmatpush1.msra.mxu0 0.0
          %559 = vmatprep.subr.mxu0 0.0
          %560 = vmatpush1.msra.mxu0 0.0
          %561 = vmatprep.subr.mxu0 0.0
          %562 = vmatpush1.msra.mxu0 0.0
          %563 = vmatprep.subr.mxu0 0.0
          %564 = vmatpush1.msra.mxu0 0.0
          %565 = vmatprep.subr.mxu0 0.0
          %566 = vmatpush1.msra.mxu0 0.0
          %567 = vmatprep.subr.mxu0 0.0
          %568 = vmatpush1.msra.mxu0 0.0
          %569 = vmatprep.subr.mxu0 0.0
          %570 = vmatpush1.msra.mxu0 0.0
          %571 = vmatprep.subr.mxu0 0.0
          %572 = vmatpush1.msra.mxu0 0.0
          %573 = vmatprep.subr.mxu0 0.0
          %574 = vmatpush1.msra.mxu0 0.0
          %575 = vmatprep.subr.mxu0 0.0
          %576 = vmatpush1.msra.mxu0 0.0
          %577 = vmatprep.subr.mxu0 0.0
          %578 = vmatpush1.msra.mxu0 0.0
          %579 = vmatprep.subr.mxu0 0.0
          %580 = vmatpush1.msra.mxu0 0.0
          %581 = vmatprep.subr.mxu0 0.0
          %582 = vmatpush1.msra.mxu0 0.0
          %583 = vmatprep.subr.mxu0 0.0
          %584 = vmatpush1.msra.mxu0 0.0
          %585 = vmatprep.subr.mxu0 0.0
          %586 = vmatpush1.msra.mxu0 0.0
          %587 = vmatprep.subr.mxu0 0.0
          %588 = vmatpush1.msra.mxu0 0.0
          %589 = vmatprep.subr.mxu0 0.0
          %590 = vmatpush1.msra.mxu0 0.0
          %591 = vmatprep.subr.mxu0 0.0
          %592 = vmatpush1.msra.mxu0 0.0
          %593 = vmatprep.subr.mxu0 0.0
          %594 = vmatpush1.msra.mxu0 0.0
          %595 = vmatprep.subr.mxu0 0.0
          %596 = vmatpush1.msra.mxu0 0.0
          %597 = vmatprep.subr.mxu0 0.0
          %598 = vmatpush1.msra.mxu0 0.0
          %599 = vmatprep.subr.mxu0 0.0
          %600 = vmatpush1.msra.mxu0 0.0
          %601 = vmatprep.subr.mxu0 0.0
          %602 = vmatpush1.msra.mxu0 0.0
          %603 = vmatprep.subr.mxu0 0.0
          %604 = vmatpush1.msra.mxu0 0.0
          %605 = vmatprep.subr.mxu0 0.0
          %606 = vmatpush1.msra.mxu0 0.0
          %607 = vmatprep.subr.mxu0 0.0
          %608 = vmatpush1.msra.mxu0 0.0
          %609 = vmatprep.subr.mxu0 0.0
          %610 = vmatpush1.msra.mxu0 0.0
          %611 = vmatprep.mubr.f32.mxu0 0.0
          %612 = vmatmul.mubr.f32.gmra.mrb[0].mxu0 %v545
          %v613 = vpop.f32.mrb[0].mxu0
          %v614 = vadd.f32 %v541, %v613
          %v615 = vpop.f32.mrb[0].mxu0
          %616 = vdwg.mxu0
          %v617 = vadd.f32 %v528, %v614
          %vm618 = vcmask 64512
          %619 = vst.msk [vmem:[#allocation2] sm:$0xff] %vm618, %v617
        $region64: #{tpu_custom_call.1} parent=59 // pred_fallthru
          _
        %v620 = vld [vmem:[#allocation2] sm:$0xff]
        %v621 = vld [vmem:[%s416] sm:$0xff]
        %v622 = vld [vmem:[%s419] sm:$0x1]
        %v624 = vlaneseq
        %v625 = vshrl.u32 %v624, 7
        %v626 = vsub.s32 0, %v625
        %v627 = vrot.slane %v622, %v626
        %vm629 = vcmask 64512
        %v631 = vsel %vm629, %v620, 0
        %633 = vmatprep.subr.mxu0 0.0
        %634 = vmatpush1.msra.mxu0 %v621
        %635 = vmatprep.subr.mxu0 0.0
        %636 = vmatpush1.msra.mxu0 0.0
        %637 = vmatprep.subr.mxu0 0.0
        %638 = vmatpush1.msra.mxu0 0.0
        %639 = vmatprep.subr.mxu0 0.0
        %640 = vmatpush1.msra.mxu0 0.0
        %641 = vmatprep.subr.mxu0 0.0
        %642 = vmatpush1.msra.mxu0 0.0
        %643 = vmatprep.subr.mxu0 0.0
        %644 = vmatpush1.msra.mxu0 0.0
        %645 = vmatprep.subr.mxu0 0.0
        %646 = vmatpush1.msra.mxu0 0.0
        %647 = vmatprep.subr.mxu0 0.0
        %648 = vmatpush1.msra.mxu0 0.0
        %649 = vmatprep.subr.mxu0 0.0
        %650 = vmatpush1.msra.mxu0 0.0
        %651 = vmatprep.subr.mxu0 0.0
        %652 = vmatpush1.msra.mxu0 0.0
        %653 = vmatprep.subr.mxu0 0.0
        %654 = vmatpush1.msra.mxu0 0.0
        %655 = vmatprep.subr.mxu0 0.0
        %656 = vmatpush1.msra.mxu0 0.0
        %657 = vmatprep.subr.mxu0 0.0
        %658 = vmatpush1.msra.mxu0 0.0
        %659 = vmatprep.subr.mxu0 0.0
        %660 = vmatpush1.msra.mxu0 0.0
        %661 = vmatprep.subr.mxu0 0.0
        %662 = vmatpush1.msra.mxu0 0.0
        %663 = vmatprep.subr.mxu0 0.0
        %664 = vmatpush1.msra.mxu0 0.0
        %665 = vmatprep.subr.mxu0 0.0
        %666 = vmatpush1.msra.mxu0 0.0
        %667 = vmatprep.subr.mxu0 0.0
        %668 = vmatpush1.msra.mxu0 0.0
        %669 = vmatprep.subr.mxu0 0.0
        %670 = vmatpush1.msra.mxu0 0.0
        %671 = vmatprep.subr.mxu0 0.0
        %672 = vmatpush1.msra.mxu0 0.0
        %673 = vmatprep.subr.mxu0 0.0
        %674 = vmatpush1.msra.mxu0 0.0
        %675 = vmatprep.subr.mxu0 0.0
        %676 = vmatpush1.msra.mxu0 0.0
        %677 = vmatprep.subr.mxu0 0.0
        %678 = vmatpush1.msra.mxu0 0.0
        %679 = vmatprep.subr.mxu0 0.0
        %680 = vmatpush1.msra.mxu0 0.0
        %681 = vmatprep.subr.mxu0 0.0
        %682 = vmatpush1.msra.mxu0 0.0
        %683 = vmatprep.subr.mxu0 0.0
        %684 = vmatpush1.msra.mxu0 0.0
        %685 = vmatprep.subr.mxu0 0.0
        %686 = vmatpush1.msra.mxu0 0.0
        %687 = vmatprep.subr.mxu0 0.0
        %688 = vmatpush1.msra.mxu0 0.0
        %689 = vmatprep.subr.mxu0 0.0
        %690 = vmatpush1.msra.mxu0 0.0
        %691 = vmatprep.subr.mxu0 0.0
        %692 = vmatpush1.msra.mxu0 0.0
        %693 = vmatprep.subr.mxu0 0.0
        %694 = vmatpush1.msra.mxu0 0.0
        %695 = vmatprep.subr.mxu0 0.0
        %696 = vmatpush1.msra.mxu0 0.0
        %697 = vmatprep.mubr.f32.mxu0 0.0
        %698 = vmatmul.mubr.f32.gmra.mrb[0].mxu0 %v631
        %v699 = vpop.f32.mrb[0].mxu0
        %v700 = vadd.f32 %v627, %v699
        %v701 = vpop.f32.mrb[0].mxu0
        %702 = vdwg.mxu0
        %v703 = vmul.f32 %v700, 0.5
        %v704 = vmul.f32 %v700, 0.70710677
        %vm705 = vcmp.ge.f32.partialorder %v704, 0.0
        %v706 = vsel %vm705, 1.0, -1.0
        %v707 = vand.u32 2147483647, %v704
        %v708 = vmul.f32 %v707, 0.3275911
        %v709 = vadd.f32 %v708, 1.0
        %v710 = vrcp.pop %v709
        %v711 = vmul.f32 1.0, %v710
        %v712 = vmul.f32 %v711, 1.0614054
        %v713 = vadd.f32 %v712, -1.4531521
        %v714 = vmul.f32 %v713, %v711
        %v715 = vadd.f32 %v714, 1.4214138
        %v716 = vmul.f32 %v715, %v711
        %v717 = vadd.f32 %v716, -0.28449672
        %v718 = vmul.f32 %v717, %v711
        %v719 = vadd.f32 %v718, 0.2548296
        %v720 = vmul.f32 %v719, %v711
        %v721 = vsub.f32 0.0, %v707
        %v722 = vmul.f32 %v721, %v707
        %v723 = vmul.f32 %v722, 1.442695
        %v724 = vpow.pop %v723
        %v725 = vmul.f32 %v720, %v724
        %v726 = vsub.f32 1.0, %v725
        %v727 = vmul.f32 %v706, %v726
        %v728 = vadd.f32 %v727, 1.0
        %v729 = vmul.f32 %v703, %v728
        %v730 = vld [vmem:[%s8] sm:$0xff]
        %v731 = vld [vmem:[%s9] sm:$0x1]
        %v733 = vlaneseq
        %v734 = vshrl.u32 %v733, 7
        %v735 = vsub.s32 0, %v734
        %v736 = vrot.slane %v731, %v735
        %v739 = vsel %vm629, %v729, 0
        %741 = vmatprep.subr.mxu0 0.0
        %742 = vmatpush1.msra.mxu0 %v730
        %743 = vmatprep.subr.mxu0 0.0
        %744 = vmatpush1.msra.mxu0 0.0
        %745 = vmatprep.subr.mxu0 0.0
        %746 = vmatpush1.msra.mxu0 0.0
        %747 = vmatprep.subr.mxu0 0.0
        %748 = vmatpush1.msra.mxu0 0.0
        %749 = vmatprep.subr.mxu0 0.0
        %750 = vmatpush1.msra.mxu0 0.0
        %751 = vmatprep.subr.mxu0 0.0
        %752 = vmatpush1.msra.mxu0 0.0
        %753 = vmatprep.subr.mxu0 0.0
        %754 = vmatpush1.msra.mxu0 0.0
        %755 = vmatprep.subr.mxu0 0.0
        %756 = vmatpush1.msra.mxu0 0.0
        %757 = vmatprep.subr.mxu0 0.0
        %758 = vmatpush1.msra.mxu0 0.0
        %759 = vmatprep.subr.mxu0 0.0
        %760 = vmatpush1.msra.mxu0 0.0
        %761 = vmatprep.subr.mxu0 0.0
        %762 = vmatpush1.msra.mxu0 0.0
        %763 = vmatprep.subr.mxu0 0.0
        %764 = vmatpush1.msra.mxu0 0.0
        %765 = vmatprep.subr.mxu0 0.0
        %766 = vmatpush1.msra.mxu0 0.0
        %767 = vmatprep.subr.mxu0 0.0
        %768 = vmatpush1.msra.mxu0 0.0
        %769 = vmatprep.subr.mxu0 0.0
        %770 = vmatpush1.msra.mxu0 0.0
        %771 = vmatprep.subr.mxu0 0.0
        %772 = vmatpush1.msra.mxu0 0.0
        %773 = vmatprep.subr.mxu0 0.0
        %774 = vmatpush1.msra.mxu0 0.0
        %775 = vmatprep.subr.mxu0 0.0
        %776 = vmatpush1.msra.mxu0 0.0
        %777 = vmatprep.subr.mxu0 0.0
        %778 = vmatpush1.msra.mxu0 0.0
        %779 = vmatprep.subr.mxu0 0.0
        %780 = vmatpush1.msra.mxu0 0.0
        %781 = vmatprep.subr.mxu0 0.0
        %782 = vmatpush1.msra.mxu0 0.0
        %783 = vmatprep.subr.mxu0 0.0
        %784 = vmatpush1.msra.mxu0 0.0
        %785 = vmatprep.subr.mxu0 0.0
        %786 = vmatpush1.msra.mxu0 0.0
        %787 = vmatprep.subr.mxu0 0.0
        %788 = vmatpush1.msra.mxu0 0.0
        %789 = vmatprep.subr.mxu0 0.0
        %790 = vmatpush1.msra.mxu0 0.0
        %791 = vmatprep.subr.mxu0 0.0
        %792 = vmatpush1.msra.mxu0 0.0
        %793 = vmatprep.subr.mxu0 0.0
        %794 = vmatpush1.msra.mxu0 0.0
        %795 = vmatprep.subr.mxu0 0.0
        %796 = vmatpush1.msra.mxu0 0.0
        %797 = vmatprep.subr.mxu0 0.0
        %798 = vmatpush1.msra.mxu0 0.0
        %799 = vmatprep.subr.mxu0 0.0
        %800 = vmatpush1.msra.mxu0 0.0
        %801 = vmatprep.subr.mxu0 0.0
        %802 = vmatpush1.msra.mxu0 0.0
        %803 = vmatprep.subr.mxu0 0.0
        %804 = vmatpush1.msra.mxu0 0.0
        %805 = vmatprep.mubr.f32.mxu0 0.0
        %806 = vmatmul.mubr.f32.gmra.mrb[0].mxu0 %v739
        %v807 = vpop.f32.mrb[0].mxu0
        %v808 = vadd.f32 %v736, %v807
        %v809 = vpop.f32.mrb[0].mxu0
        %810 = vdwg.mxu0
        %vm811 = vcmask 261120
        %812 = vst.msk [vmem:[%s403] sm:$0xff] %vm811, %v808
        %s813 = sand.u32 %s276, 1
        %s814 = scalar_lea.sflag [#allocation4], %s813
        %s815 = sand.u32 %s276, 1
        %s816 = smul.addr %s815, 8
        %s817 = scalar_lea.vmem [#allocation3], %s816
        // Predicated region
        $region65: #{tpu_custom_call.1} parent=59 // pred_check
          %p818 = pneg %p286
        $region66: #{tpu_custom_call.1} parent=59 // pred_check_branch
          %820 = sbr.rel (%p818) target = $region68
        $region67: #{tpu_custom_call.1} parent=59 // pred_region
          %s822 = ssub.s32 128, 128
          %823 = vsyncadd %s814, %s822
          %s824 = sadd.s32 %s28, %s29
          %s825 = smul.addr %s824, 128
          %s826 = scalar_lea.hbm %s10, %s825
          %s828 = sshll.u32 %s817, 4
          %s829 = int_to_ptr.vmem [resolvable:$true] %s828
          %831 = dma.vmem_to_hbm [thread:$0]  %s829, 128, %s826, %s814
        $region68: #{tpu_custom_call.1} parent=59 // pred_fallthru
          _
      $region60: #{tpu_custom_call.1} parent=5 // pred_fallthru
        _
      %p832 = scmp.le.s32.totalorder 2, %s19
      // Predicated region
      $region69: #{tpu_custom_call.1} parent=5 // pred_check
        %p833 = pneg %p832
      $region70: #{tpu_custom_call.1} parent=5 // pred_check_branch
        %835 = sbr.rel (%p833) target = $region72
      $region71: #{tpu_custom_call.1} parent=5 // pred_region
        %s836 = ssub.s32 %s19, 2
        // Predicated region
        $region73: #{tpu_custom_call.1} parent=71 // pred_check
          %p837 = pneg %p292
        $region74: #{tpu_custom_call.1} parent=71 // pred_check_branch
          %839 = sbr.rel (%p837) target = $region76
        $region75: #{tpu_custom_call.1} parent=71 // pred_region
          %s840 = sand.u32 %s277, 1
          %s841 = scalar_lea.sflag [#allocation4], %s840
          %s842 = sand.u32 %s277, 1
          %s843 = smul.addr %s842, 8
          %s844 = scalar_lea.vmem [#allocation3], %s843
          %845 = dma.done %s841, 128
        $region76: #{tpu_custom_call.1} parent=71 // pred_fallthru
          _
      $region72: #{tpu_custom_call.1} parent=5 // pred_fallthru
        _
    $region6: #{tpu_custom_call.1} parent=1 // loop_footer
      %s23 = sadd.s32 1, %s19
    $region7: #{tpu_custom_call.1} parent=1 // loop_footer_branch
      %18 = sbr.rel target = $region3
    $region8: #{tpu_custom_call.1} parent=1 // loop_exit
      _
    %846 = vsyncpa [#allocation4], 1
    %s847 = scalar_lea.sflag [#allocation4], 1
    %848 = vsyncpa %s847, 1

</llo_original>
